<compile_context>
chip_gen: v7x
topology: tpu7x:2x2x1
jax: 0.10.0
libtpu: 0.0.40
codegen_flags: <defaults>
</compile_context>

<pallas_src>
import jax
import jax.numpy as jnp
from jax.experimental import pallas as pl
from jax.experimental.pallas import tpu as pltpu


def _make_kernel(seq_len, ts, need_mask):
    inv_s = 1.0 / float(seq_len)

    def kernel(x_ref, wmax_ref, wmean_ref, b_ref, o_ref, max_acc, sum_acc):
        k = pl.program_id(1)
        last = pl.num_programs(1) - 1

        @pl.when(k == 0)
        def _init():
            max_acc[...] = jnp.full_like(max_acc, -jnp.inf)
            sum_acc[...] = jnp.zeros_like(sum_acc)

        x = x_ref[...]                        # (TB, TS, H), native dtype

        def _accumulate(x_for_max, x_for_sum):
            # max is exact in the native dtype; upcast only the (TB, H) result.
            max_acc[...] = jnp.maximum(
                max_acc[...], jnp.max(x_for_max, axis=1).astype(jnp.float32))
            # sum accumulates in f32 regardless of the streamed dtype.
            sum_acc[...] = sum_acc[...] + jnp.sum(
                x_for_sum, axis=1, dtype=jnp.float32)

        if need_mask:
            # Only the last seq tile can contain out-of-bounds (garbage) rows;
            # keep the steady-state iterations mask-free.
            @pl.when(k != last)
            def _steady():
                _accumulate(x, x)

            @pl.when(k == last)
            def _edge():
                s_idx = k * ts + jax.lax.broadcasted_iota(
                    jnp.int32, (1, ts, 1), 1)
                valid = s_idx < seq_len
                _accumulate(jnp.where(valid, x, -jnp.inf),
                            jnp.where(valid, x, 0))
        else:
            _accumulate(x, x)

        @pl.when(k == last)
        def _finalize():
            mean_p = sum_acc[...] * inv_s
            # cat([max, mean]) @ W^T  ==  max @ W^T[:H] + mean @ W^T[H:]
            y = jnp.dot(max_acc[...], wmax_ref[...],
                        preferred_element_type=jnp.float32)
            y = y + jnp.dot(mean_p, wmean_ref[...],
                            preferred_element_type=jnp.float32)
            y = y + b_ref[...].astype(jnp.float32)
            o_ref[...] = jnp.tanh(y).astype(o_ref.dtype)

    return kernel


def _round_up(v, m):
    return ((v + m - 1) // m) * m


def _tile_plan(B, S, H, x_itemsize):
    """Generation-aware (TB, TS, vmem_cap_bytes)."""
    kind = ""
    try:
        kind = jax.devices()[0].device_kind.lower()
    except Exception:
        pass
    if "v5" in kind:
        per_buf, vmem_cap = 4 << 20, 96 << 20      # 128 MiB physical VMEM
    elif "v7" in kind or "7x" in kind:
        per_buf, vmem_cap = 8 << 20, 48 << 20      # 64 MiB physical VMEM
    elif "v6" in kind:
        per_buf, vmem_cap = 12 << 20, 100 << 20    # 128 MiB physical VMEM
    else:
        per_buf, vmem_cap = 4 << 20, 32 << 20      # conservative default

    # --- batch tile: >= 2 batch tiles when possible (v7x megacore) and keep
    #     the (TB, H) output block sublane-aligned (TB multiple of 8 or == B).
    if B <= 8:
        TB = B
    else:
        TB = min(128, _round_up(pl.cdiv(B, 2), 8))

    # Shrink TB (do NOT inflate the TS floor) if even an 8-row seq tile would
    # exceed the per-buffer budget (wide-H models).
    min_seq_bytes = 8 * H * x_itemsize
    if TB > 8 and TB * min_seq_bytes > per_buf:
        TB = max(8, ((per_buf // min_seq_bytes) // 8) * 8)

    # --- seq tile: fill the per-buffer target, multiple of 8 (or full S).
    row_bytes = max(1, TB * H * x_itemsize)
    TS = max(8, ((per_buf // row_bytes) // 8) * 8)
    if TS >= S:
        TS = S
        # Short sequences: grow the batch tile toward the budget instead,
        # while keeping >= 2 batch tiles.
        if B > 8:
            max_tb = ((per_buf // max(1, S * H * x_itemsize)) // 8) * 8
            if max_tb > TB:
                TB = min(max_tb, _round_up(pl.cdiv(B, 2), 8))
    return TB, TS, vmem_cap


def custom_pooling_concat(x, w_max_t, w_mean_t, b, *, tb=None, ts=None):
    """Fused max/mean pooling + linear + tanh.

    x        : (B, S, H)
    w_max_t  : (H, H)  == W^T[:H]  (W is the torch (H, 2H) linear weight)
    w_mean_t : (H, H)  == W^T[H:]
    b        : (1, H)
    returns  : (B, H)
    """
    B, S, H = x.shape
    assert w_max_t.shape == (H, H) and w_mean_t.shape == (H, H)
    assert b.shape == (1, H)

    x_itemsize = x.dtype.itemsize
    TB, TS, vmem_cap = _tile_plan(B, S, H, x_itemsize)
    if tb is not None:
        TB = min(tb, B)
        assert TB == B or TB % 8 == 0, "tb must be a multiple of 8 (or == B)"
    if ts is not None:
        TS = min(ts, S)
        assert TS == S or TS % 8 == 0, "ts must be a multiple of 8 (or == S)"

    grid = (pl.cdiv(B, TB), pl.cdiv(S, TS))
    need_mask = (S % TS) != 0
    kernel = _make_kernel(S, TS, need_mask)

    # Explicit scoped-VMEM budget from the real footprint.
    w_itemsize = w_max_t.dtype.itemsize
    x_tile_bytes = TB * TS * H * x_itemsize
    const_bytes = 2 * H * H * w_itemsize + H * b.dtype.itemsize  # single-buffered
    scratch_bytes = 2 * TB * H * 4
    out_buf_bytes = 2 * TB * H * x_itemsize
    temp_bytes = 2 * TB * TS * H * 4            # f32 upcast / mask temporaries
    footprint = (2 * x_tile_bytes + const_bytes + scratch_bytes
                 + out_buf_bytes + temp_bytes)
    vmem_limit = int(min(vmem_cap, max(32 << 20, footprint + (4 << 20))))

    cost = pl.CostEstimate(
        flops=4 * B * H * H,
        transcendentals=B * H,
        bytes_accessed=(B * S * H * x_itemsize
                        + 2 * H * H * w_itemsize
                        + H * b.dtype.itemsize
                        + B * H * x_itemsize),
    )

    out = pl.pallas_call(
        kernel,
        out_shape=jax.ShapeDtypeStruct((B, H), x.dtype),
        grid_spec=pltpu.PrefetchScalarGridSpec(
            num_scalar_prefetch=0,
            grid=grid,
            in_specs=[
                # x streamed over (batch tile i, seq tile k): auto double-buffered
                pl.BlockSpec((TB, TS, H), lambda i, k: (i, k, 0)),
                # weight halves & bias: constant index -> DMA'd once, resident,
                # single-buffered (no need to double-buffer constants).
                pl.BlockSpec((H, H), lambda i, k: (0, 0),
                             pipeline_mode=pl.Buffered(1)),
                pl.BlockSpec((H, H), lambda i, k: (0, 0),
                             pipeline_mode=pl.Buffered(1)),
                pl.BlockSpec((1, H), lambda i, k: (0, 0),
                             pipeline_mode=pl.Buffered(1)),
            ],
            # same output block across k -> output resident across reduction
            out_specs=pl.BlockSpec((TB, H), lambda i, k: (i, 0)),
            scratch_shapes=[
                pltpu.VMEM((TB, H), jnp.float32),   # running max
                pltpu.VMEM((TB, H), jnp.float32),   # running sum
            ],
        ),
        compiler_params=pltpu.CompilerParams(
            dimension_semantics=("parallel", "arbitrary"),
            vmem_limit_bytes=vmem_limit,
        ),
        cost_estimate=cost,
    )(x, w_max_t, w_mean_t, b)
    return out


def reference_jax(x, w_t, b):
    xf = x.astype(jnp.float32)
    max_p = jnp.max(xf, axis=1)
    mean_p = jnp.mean(xf, axis=1)
    cat = jnp.concatenate([max_p, mean_p], axis=-1)
    return jnp.tanh(cat @ w_t.astype(jnp.float32) + b.astype(jnp.float32))


if __name__ == "__main__":
    key = jax.random.PRNGKey(0)
    kx, kw, kb, krest = jax.random.split(key, 4)

    # ---- small test at the module's nominal shapes -------------------------
    B, S, H = 2, 8, 32
    x = jax.random.normal(kx, (B, S, H), dtype=jnp.float32)
    fan_in = 2 * H
    bound = 1.0 / (fan_in ** 0.5)
    w_torch = jax.random.uniform(kw, (H, 2 * H), dtype=jnp.float32,
                                 minval=-bound, maxval=bound)   # torch layout
    b = jax.random.uniform(kb, (1, H), dtype=jnp.float32,
                           minval=-bound, maxval=bound)
    w_t = w_torch.T                                             # (2H, H)

    out = custom_pooling_concat(x, w_t[:H], w_t[H:], b)
    out = jax.block_until_ready(out)
    ref = reference_jax(x, w_t, b)
    assert out.shape == (B, H)
    assert jnp.allclose(out, ref, atol=2e-5, rtol=2e-5), "mismatch (small)"

    # ---- tiled / masked path: non-aligned B and S, no wrapper padding ------
    B2, S2, H2 = 10, 72, 128
    kx2, kw2, kb2, kx3 = jax.random.split(krest, 4)
    x2 = jax.random.normal(kx2, (B2, S2, H2), dtype=jnp.float32)
    bound2 = 1.0 / ((2 * H2) ** 0.5)
    w2 = jax.random.uniform(kw2, (H2, 2 * H2), dtype=jnp.float32,
                            minval=-bound2, maxval=bound2)
    b2 = jax.random.uniform(kb2, (1, H2), dtype=jnp.float32,
                            minval=-bound2, maxval=bound2)
    w2_t = w2.T
    # tb=8, ts=32 -> grid=(2, 3): batch edge (10 rows / TB=8) and masked
    # seq edge (72 rows / TS=32), exercising the pl.when-gated mask path.
    out2 = custom_pooling_concat(x2, w2_t[:H2], w2_t[H2:], b2, tb=8, ts=32)
    out2 = jax.block_until_ready(out2)
    ref2 = reference_jax(x2, w2_t, b2)
    assert out2.shape == (B2, H2)
    assert jnp.allclose(out2, ref2, atol=2e-5, rtol=2e-5), "mismatch (tiled)"

    # ---- bf16 streaming path (native-dtype max, f32 sum accumulation) ------
    B3, S3, H3 = 12, 40, 128
    x3 = jax.random.normal(kx3, (B3, S3, H3), dtype=jnp.float32
                           ).astype(jnp.bfloat16)
    out3 = custom_pooling_concat(x3, w2_t[:H3], w2_t[H3:], b2, tb=8, ts=16)
    out3 = jax.block_until_ready(out3)
    ref3 = reference_jax(x3, w2_t, b2)
    assert out3.shape == (B3, H3)
    assert jnp.allclose(out3.astype(jnp.float32), ref3, atol=2e-2), \
        "mismatch (bf16)"

    print("KERNEL_OK")
</pallas_src>

<mosaic_0001>
module attributes {stable_mosaic.version = 11 : i64} {
  func.func @kernel(%arg0: i32, %arg1: i32, %arg2: memref<2x8x32xf32, #tpu.memory_space<vmem>>, %arg3: memref<32x32xf32, #tpu.memory_space<vmem>>, %arg4: memref<32x32xf32, #tpu.memory_space<vmem>>, %arg5: memref<1x32xf32, #tpu.memory_space<vmem>>, %arg6: memref<2x32xf32, #tpu.memory_space<vmem>>, %arg7: memref<2x32xf32, #tpu.memory_space<vmem>>, %arg8: memref<2x32xf32, #tpu.memory_space<vmem>>) attributes {dimension_semantics = [#tpu.dimension_semantics<parallel>, #tpu.dimension_semantics<arbitrary>], iteration_bounds = array<i64: 1, 1>, scalar_prefetch = 0 : i64, scratch_operands = 2 : i64, tpu.core_type = #tpu.core_type<tc>, window_params = [{transform_indices = @transform_0, window_bounds = array<i64: 2, 8, 32>}, {pipeline_mode = #tpu.pipeline_mode<synchronous>, transform_indices = @transform_1, window_bounds = array<i64: 32, 32>}, {pipeline_mode = #tpu.pipeline_mode<synchronous>, transform_indices = @transform_2, window_bounds = array<i64: 32, 32>}, {pipeline_mode = #tpu.pipeline_mode<synchronous>, transform_indices = @transform_3, window_bounds = array<i64: 1, 32>}, {transform_indices = @transform_4, window_bounds = array<i64: 2, 32>}]} {
    %c0_i32 = arith.constant 0 : i32
    %0 = arith.cmpi eq, %arg1, %c0_i32 : i32
    %1 = arith.extui %0 : i1 to i32
    %c0_i32_0 = arith.constant 0 : i32
    %2 = arith.cmpi ne, %1, %c0_i32_0 : i32
    scf.if %2 {
      %cst_14 = arith.constant 0xFF800000 : f32
      %15 = vector.broadcast %cst_14 : f32 to vector<2x32xf32>
      %c0_15 = arith.constant 0 : index
      %c0_16 = arith.constant 0 : index
      %16 = vector.load %arg7[%c0_15, %c0_16] : memref<2x32xf32, #tpu.memory_space<vmem>>, vector<2x32xf32>
      tpu.vector_store %arg7[%c0_15, %c0_16], %15 {strides = array<i32>} : memref<2x32xf32, #tpu.memory_space<vmem>>, vector<2x32xf32>,
      %cst_17 = arith.constant 0.000000e+00 : f32
      %17 = vector.broadcast %cst_17 : f32 to vector<2x32xf32>
      %c0_18 = arith.constant 0 : index
      %c0_19 = arith.constant 0 : index
      %18 = vector.load %arg8[%c0_18, %c0_19] : memref<2x32xf32, #tpu.memory_space<vmem>>, vector<2x32xf32>
      tpu.vector_store %arg8[%c0_18, %c0_19], %17 {strides = array<i32>} : memref<2x32xf32, #tpu.memory_space<vmem>>, vector<2x32xf32>,
    } else {
    }
    %c0 = arith.constant 0 : index
    %c0_1 = arith.constant 0 : index
    %c0_2 = arith.constant 0 : index
    %3 = vector.load %arg2[%c0, %c0_1, %c0_2] : memref<2x8x32xf32, #tpu.memory_space<vmem>>, vector<2x8x32xf32>
    %c0_3 = arith.constant 0 : index
    %c0_4 = arith.constant 0 : index
    %4 = vector.load %arg7[%c0_3, %c0_4] : memref<2x32xf32, #tpu.memory_space<vmem>>, vector<2x32xf32>
    %cst = arith.constant dense<0xFF800000> : vector<2x32xf32>
    %5 = vector.multi_reduction <maximumf>, %3, %cst [1] : vector<2x8x32xf32> to vector<2x32xf32>
    %6 = arith.maximumf %4, %5 : vector<2x32xf32>
    %c0_5 = arith.constant 0 : index
    %c0_6 = arith.constant 0 : index
    %7 = vector.load %arg7[%c0_5, %c0_6] : memref<2x32xf32, #tpu.memory_space<vmem>>, vector<2x32xf32>
    tpu.vector_store %arg7[%c0_5, %c0_6], %6 {strides = array<i32>} : memref<2x32xf32, #tpu.memory_space<vmem>>, vector<2x32xf32>,
    %c0_7 = arith.constant 0 : index
    %c0_8 = arith.constant 0 : index
    %8 = vector.load %arg8[%c0_7, %c0_8] : memref<2x32xf32, #tpu.memory_space<vmem>>, vector<2x32xf32>
    %cst_9 = arith.constant dense<0.000000e+00> : vector<2x32xf32>
    %9 = vector.multi_reduction <add>, %3, %cst_9 [1] : vector<2x8x32xf32> to vector<2x32xf32>
    %10 = arith.addf %8, %9 : vector<2x32xf32>
    %c0_10 = arith.constant 0 : index
    %c0_11 = arith.constant 0 : index
    %11 = vector.load %arg8[%c0_10, %c0_11] : memref<2x32xf32, #tpu.memory_space<vmem>>, vector<2x32xf32>
    tpu.vector_store %arg8[%c0_10, %c0_11], %10 {strides = array<i32>} : memref<2x32xf32, #tpu.memory_space<vmem>>, vector<2x32xf32>,
    %c0_i32_12 = arith.constant 0 : i32
    %12 = arith.cmpi eq, %arg1, %c0_i32_12 : i32
    %13 = arith.extui %12 : i1 to i32
    %c0_i32_13 = arith.constant 0 : i32
    %14 = arith.cmpi ne, %13, %c0_i32_13 : i32
    scf.if %14 {
      %c0_14 = arith.constant 0 : index
      %c0_15 = arith.constant 0 : index
      %15 = vector.load %arg8[%c0_14, %c0_15] : memref<2x32xf32, #tpu.memory_space<vmem>>, vector<2x32xf32>
      %cst_16 = arith.constant 1.250000e-01 : f32
      %16 = vector.broadcast %cst_16 : f32 to vector<2x32xf32>
      %17 = arith.mulf %15, %16 : vector<2x32xf32>
      %c0_17 = arith.constant 0 : index
      %c0_18 = arith.constant 0 : index
      %18 = vector.load %arg7[%c0_17, %c0_18] : memref<2x32xf32, #tpu.memory_space<vmem>>, vector<2x32xf32>
      %c0_19 = arith.constant 0 : index
      %c0_20 = arith.constant 0 : index
      %19 = vector.load %arg3[%c0_19, %c0_20] : memref<32x32xf32, #tpu.memory_space<vmem>>, vector<32x32xf32>
      %cst_21 = arith.constant dense<0.000000e+00> : vector<2x32xf32>
      %20 = tpu.matmul %18, %19, %cst_21 {dimension_numbers = #tpu.dot_dimension_numbers<[1], [0], [0], [1], [0, 0, 1, 1], [], []>} : vector<2x32xf32>, vector<32x32xf32>, vector<2x32xf32> -> vector<2x32xf32>
      %c0_22 = arith.constant 0 : index
      %c0_23 = arith.constant 0 : index
      %21 = vector.load %arg4[%c0_22, %c0_23] : memref<32x32xf32, #tpu.memory_space<vmem>>, vector<32x32xf32>
      %cst_24 = arith.constant dense<0.000000e+00> : vector<2x32xf32>
      %22 = tpu.matmul %17, %21, %cst_24 {dimension_numbers = #tpu.dot_dimension_numbers<[1], [0], [0], [1], [0, 0, 1, 1], [], []>} : vector<2x32xf32>, vector<32x32xf32>, vector<2x32xf32> -> vector<2x32xf32>
      %23 = arith.addf %20, %22 : vector<2x32xf32>
      %c0_25 = arith.constant 0 : index
      %c0_26 = arith.constant 0 : index
      %24 = vector.load %arg5[%c0_25, %c0_26] : memref<1x32xf32, #tpu.memory_space<vmem>>, vector<1x32xf32>
      %25 = vector.broadcast %24 : vector<1x32xf32> to vector<2x32xf32>
      %26 = arith.addf %23, %25 : vector<2x32xf32>
      %27 = math.tanh %26 : vector<2x32xf32>
      %c0_27 = arith.constant 0 : index
      %c0_28 = arith.constant 0 : index
      %28 = vector.load %arg6[%c0_27, %c0_28] : memref<2x32xf32, #tpu.memory_space<vmem>>, vector<2x32xf32>
      tpu.vector_store %arg6[%c0_27, %c0_28], %27 {strides = array<i32>} : memref<2x32xf32, #tpu.memory_space<vmem>>, vector<2x32xf32>,
    } else {
    }
    return
  }
  func.func @transform_0(%arg0: i32, %arg1: i32) -> (i32, i32, i32) {
    %c0_i32 = arith.constant 0 : i32
    %c0_i32_0 = arith.constant 0 : i32
    return %arg0, %arg1, %c0_i32 : i32, i32, i32
  }
  func.func @transform_1(%arg0: i32, %arg1: i32) -> (i32, i32) {
    %c0_i32 = arith.constant 0 : i32
    %c0_i32_0 = arith.constant 0 : i32
    %c0_i32_1 = arith.constant 0 : i32
    return %c0_i32, %c0_i32_0 : i32, i32
  }
  func.func @transform_2(%arg0: i32, %arg1: i32) -> (i32, i32) {
    %c0_i32 = arith.constant 0 : i32
    %c0_i32_0 = arith.constant 0 : i32
    %c0_i32_1 = arith.constant 0 : i32
    return %c0_i32, %c0_i32_0 : i32, i32
  }
  func.func @transform_3(%arg0: i32, %arg1: i32) -> (i32, i32) {
    %c0_i32 = arith.constant 0 : i32
    %c0_i32_0 = arith.constant 0 : i32
    %c0_i32_1 = arith.constant 0 : i32
    return %c0_i32, %c0_i32_0 : i32, i32
  }
  func.func @transform_4(%arg0: i32, %arg1: i32) -> (i32, i32) {
    %c0_i32 = arith.constant 0 : i32
    %c0_i32_0 = arith.constant 0 : i32
    return %arg0, %c0_i32 : i32, i32
  }
}

</mosaic_0001>

<llo_original>
// kernel: tpu_custom_call.1
$region0: #{tpu_custom_call.1}
  #allocation0 [shape = 'u32[]', space=smem, size = 0x4, offset = 0x4, fixed_abs, tag = 'smem constant byte address 0x4 - core index']
  #allocation1 [shape = 'u32[144,128]{1,0:T(1,128)}', space=vmem, size = 0x12000, scoped, tag = 'internal scratch']
  #allocation2 [shape = 'f32[2,32]{1,0:T(2,128)}', space=vmem, size = 0x400, scoped, tag = 'scratch operand']
  #allocation3 [shape = 'f32[2,32]{1,0:T(2,128)}', space=vmem, size = 0x400, scoped, tag = 'scratch operand']
  %s0 = inlined_call_operand.hbm [shape: f32[2,8,32], index: 0, kind: input, shape index: {}]
  %s1 = inlined_call_operand.hbm [shape: f32[32,32], index: 1, kind: input, shape index: {}]
  %s2 = inlined_call_operand.hbm [shape: f32[32,32], index: 2, kind: input, shape index: {}]
  %s3 = inlined_call_operand.vmem [shape: f32[1,32], index: 3, kind: input, shape index: {}]
  %s4 = inlined_call_operand.hbm [shape: f32[2,32], index: 4, kind: output, shape index: {}]
  %s5 = sld [smem:[#allocation0]]
  $region46: #{tpu_custom_call.1} parent=0
    _
  %s7 = ssub.s32 1, %s5
  %s8 = scalar_select 0, %s7, %s5
  $region1: #{tpu_custom_call.1} parent=0
    #allocation4 [shape = 'u8[8192]{0}', space=vmem, size = 0x2000, scoped, tag = 'input window, operand 0, single buffered']
    #allocation5 [shape = 's32[1]{0}', space=sflag, size = 0x4, scoped, tag = 'scoped memory for tpu_custom_call.1']
    #allocation6 [shape = 's32[1]{0}', space=sflag, size = 0x4, scoped, tag = 'scoped memory for tpu_custom_call.1']
    #allocation7 [shape = 'u8[16384]{0}', space=vmem, size = 0x4000, scoped, tag = 'input window, operand 1, single buffered']
    #allocation8 [shape = 's32[1]{0}', space=sflag, size = 0x4, scoped, tag = 'scoped memory for tpu_custom_call.1']
    #allocation9 [shape = 'u8[16384]{0}', space=vmem, size = 0x4000, scoped, tag = 'input window, operand 2, single buffered']
    #allocation10 [shape = 'u8[1024]{0}', space=vmem, size = 0x400, scoped, tag = 'output window, operand 0, single buffered']
    %9 = vsyncpa [#allocation5], 0
    %10 = vsyncpa [#allocation8], 0
    %11 = vsyncpa [#allocation6], 0
    // Predicated region
    $region2: #{tpu_custom_call.1} parent=1 // pred_check
      _
    $region3: #{tpu_custom_call.1} parent=1 // pred_check_branch
      %13 = sbr.rel (0) target = $region5
    $region4: #{tpu_custom_call.1} parent=1 // pred_region
      %s15 = ssub.s32 256, 256
      %16 = vsyncadd [#allocation5], %s15
      %s17 = sshll.u32 [#allocation4], 4
      %s18 = int_to_ptr.vmem [resolvable:$true] %s17
      %23 = dma.hbm_to_vmem [thread:$0]  %s0, 256, %s18, [#allocation5], 128, 128, 8
    $region5: #{tpu_custom_call.1} parent=1 // pred_fallthru
      _
    // Predicated region
    $region6: #{tpu_custom_call.1} parent=1 // pred_check
      _
    $region7: #{tpu_custom_call.1} parent=1 // pred_check_branch
      %25 = sbr.rel (0) target = $region9
    $region8: #{tpu_custom_call.1} parent=1 // pred_region
      %s27 = ssub.s32 512, 512
      %28 = vsyncadd [#allocation8], %s27
      %s29 = sshll.u32 [#allocation7], 4
      %s30 = int_to_ptr.vmem [resolvable:$true] %s29
      %35 = dma.hbm_to_vmem [thread:$0]  %s1, 512, %s30, [#allocation8], 128, 128, 8
    $region9: #{tpu_custom_call.1} parent=1 // pred_fallthru
      _
    // Predicated region
    $region10: #{tpu_custom_call.1} parent=1 // pred_check
      _
    $region11: #{tpu_custom_call.1} parent=1 // pred_check_branch
      %37 = sbr.rel (0) target = $region13
    $region12: #{tpu_custom_call.1} parent=1 // pred_region
      %s39 = ssub.s32 512, 512
      %40 = vsyncadd [#allocation8], %s39
      %s41 = sshll.u32 [#allocation9], 4
      %s42 = int_to_ptr.vmem [resolvable:$true] %s41
      %47 = dma.hbm_to_vmem [thread:$0]  %s2, 512, %s42, [#allocation8], 128, 128, 8
    $region13: #{tpu_custom_call.1} parent=1 // pred_fallthru
      _
    // Predicated region
    $region14: #{tpu_custom_call.1} parent=1 // pred_check
      _
    $region15: #{tpu_custom_call.1} parent=1 // pred_check_branch
      %49 = sbr.rel (0) target = $region17
    $region16: #{tpu_custom_call.1} parent=1 // pred_region
      _
    $region17: #{tpu_custom_call.1} parent=1 // pred_fallthru
      _
    // Predicated region
    $region18: #{tpu_custom_call.1} parent=1 // pred_check
      _
    $region19: #{tpu_custom_call.1} parent=1 // pred_check_branch
      %51 = sbr.rel (0) target = $region21
    $region20: #{tpu_custom_call.1} parent=1 // pred_region
      %52 = dma.done [#allocation5], 256
    $region21: #{tpu_custom_call.1} parent=1 // pred_fallthru
      _
    // Predicated region
    $region22: #{tpu_custom_call.1} parent=1 // pred_check
      _
    $region23: #{tpu_custom_call.1} parent=1 // pred_check_branch
      %54 = sbr.rel (0) target = $region25
    $region24: #{tpu_custom_call.1} parent=1 // pred_region
      %55 = dma.done [#allocation8], 512
    $region25: #{tpu_custom_call.1} parent=1 // pred_fallthru
      _
    // Predicated region
    $region26: #{tpu_custom_call.1} parent=1 // pred_check
      _
    $region27: #{tpu_custom_call.1} parent=1 // pred_check_branch
      %57 = sbr.rel (0) target = $region29
    $region28: #{tpu_custom_call.1} parent=1 // pred_region
      %58 = dma.done [#allocation8], 512
    $region29: #{tpu_custom_call.1} parent=1 // pred_fallthru
      _
    %p59 = scmp.eq.s32.totalorder 0, 0
    // Predicated region
    $region30: #{tpu_custom_call.1} parent=1 // pred_check
      %p60 = pneg %p59
    $region31: #{tpu_custom_call.1} parent=1 // pred_check_branch
      %62 = sbr.rel (%p60) target = $region33
    $region32: #{tpu_custom_call.1} parent=1 // pred_region
      %vm63 = vcmask 254976
      %64 = vst.msk [vmem:[#allocation2] sm:$0x3] %vm63, -inf
      %65 = vst.msk [vmem:[#allocation3] sm:$0x3] %vm63, 0.0
    $region33: #{tpu_custom_call.1} parent=1 // pred_fallthru
      _
    %v66 = vld [vmem:[#allocation4] sm:$0xff]
    %v67 = vld [vmem:[#allocation4 + $0x8] sm:$0xff]
    %v68 = vld [vmem:[#allocation2] sm:$0x3]
    %vm69 = vcmask 261120
    %v70 = vsel %vm69, %v66, -inf
    %v71 = vrot.slane %v70, 4
    %v72 = vmax.f32 %v70, %v71
    %v73 = vrot.slane %v72, 2
    %v74 = vmax.f32 %v72, %v73
    %v75 = vrot.slane %v74, 1
    %v76 = vmax.f32 %v74, %v75
    %v77 = vsel %vm69, %v67, -inf
    %v78 = vrot.slane %v77, 4
    %v79 = vmax.f32 %v77, %v78
    %v80 = vrot.slane %v79, 2
    %v81 = vmax.f32 %v79, %v80
    %v82 = vrot.slane %v81, 1
    %v83 = vmax.f32 %v81, %v82
    %vm86 = vcmask 1041409
    %v87 = vsel %vm86, %v83, %v76
    %v89 = vmax.f32 %v68, %v87
    %vm90 = vcmask 254976
    %91 = vst.msk [vmem:[#allocation2] sm:$0x3] %vm90, %v89
    %v92 = vld [vmem:[#allocation3] sm:$0x3]
    %v93 = vsel %vm69, %v66, 0.0
    %v94 = vrot.slane %v93, 4
    %v95 = vadd.f32 %v93, %v94
    %v96 = vrot.slane %v95, 2
    %v97 = vadd.f32 %v95, %v96
    %v98 = vrot.slane %v97, 1
    %v99 = vadd.f32 %v97, %v98
    %v100 = vsel %vm69, %v67, 0.0
    %v101 = vrot.slane %v100, 4
    %v102 = vadd.f32 %v100, %v101
    %v103 = vrot.slane %v102, 2
    %v104 = vadd.f32 %v102, %v103
    %v105 = vrot.slane %v104, 1
    %v106 = vadd.f32 %v104, %v105
    %v109 = vsel %vm86, %v106, %v99
    %v111 = vadd.f32 %v92, %v109
    %112 = vst.msk [vmem:[#allocation3] sm:$0x3] %vm90, %v111
    // Predicated region
    $region34: #{tpu_custom_call.1} parent=1 // pred_check
      %p113 = pneg %p59
    $region35: #{tpu_custom_call.1} parent=1 // pred_check_branch
      %115 = sbr.rel (%p113) target = $region37
    $region36: #{tpu_custom_call.1} parent=1 // pred_region
      %v116 = vld [vmem:[#allocation3] sm:$0x3]
      %v117 = vmul.f32 %v116, 0.125
      %v118 = vld [vmem:[#allocation2] sm:$0x3]
      %v119 = vld [vmem:[#allocation7] sm:$0xff]
      %v120 = vld [vmem:[#allocation7 + $0x8] sm:$0xff]
      %v121 = vld [vmem:[#allocation7 + $0x10] sm:$0xff]
      %v122 = vld [vmem:[#allocation7 + $0x18] sm:$0xff]
      %v123 = vld [vmem:[#allocation9] sm:$0xff]
      %v124 = vld [vmem:[#allocation9 + $0x8] sm:$0xff]
      %v125 = vld [vmem:[#allocation9 + $0x10] sm:$0xff]
      %v126 = vld [vmem:[#allocation9 + $0x18] sm:$0xff]
      %v128 = vsel %vm69, %v117, 0
      %130 = vmatprep.subr.mxu0 0.0
      %131 = vmatpush1.msra.mxu0 %v123
      %132 = vmatprep.subr.mxu0 0.0
      %133 = vmatpush1.msra.mxu0 %v124
      %134 = vmatprep.subr.mxu0 0.0
      %135 = vmatpush1.msra.mxu0 %v125
      %136 = vmatprep.subr.mxu0 0.0
      %137 = vmatpush1.msra.mxu0 %v126
      %138 = vmatprep.subr.mxu0 0.0
      %139 = vmatpush1.msra.mxu0 0.0
      %140 = vmatprep.subr.mxu0 0.0
      %141 = vmatpush1.msra.mxu0 0.0
      %142 = vmatprep.subr.mxu0 0.0
      %143 = vmatpush1.msra.mxu0 0.0
      %144 = vmatprep.subr.mxu0 0.0
      %145 = vmatpush1.msra.mxu0 0.0
      %146 = vmatprep.subr.mxu0 0.0
      %147 = vmatpush1.msra.mxu0 0.0
      %148 = vmatprep.subr.mxu0 0.0
      %149 = vmatpush1.msra.mxu0 0.0
      %150 = vmatprep.subr.mxu0 0.0
      %151 = vmatpush1.msra.mxu0 0.0
      %152 = vmatprep.subr.mxu0 0.0
      %153 = vmatpush1.msra.mxu0 0.0
      %154 = vmatprep.subr.mxu0 0.0
      %155 = vmatpush1.msra.mxu0 0.0
      %156 = vmatprep.subr.mxu0 0.0
      %157 = vmatpush1.msra.mxu0 0.0
      %158 = vmatprep.subr.mxu0 0.0
      %159 = vmatpush1.msra.mxu0 0.0
      %160 = vmatprep.subr.mxu0 0.0
      %161 = vmatpush1.msra.mxu0 0.0
      %162 = vmatprep.subr.mxu0 0.0
      %163 = vmatpush1.msra.mxu0 0.0
      %164 = vmatprep.subr.mxu0 0.0
      %165 = vmatpush1.msra.mxu0 0.0
      %166 = vmatprep.subr.mxu0 0.0
      %167 = vmatpush1.msra.mxu0 0.0
      %168 = vmatprep.subr.mxu0 0.0
      %169 = vmatpush1.msra.mxu0 0.0
      %170 = vmatprep.subr.mxu0 0.0
      %171 = vmatpush1.msra.mxu0 0.0
      %172 = vmatprep.subr.mxu0 0.0
      %173 = vmatpush1.msra.mxu0 0.0
      %174 = vmatprep.subr.mxu0 0.0
      %175 = vmatpush1.msra.mxu0 0.0
      %176 = vmatprep.subr.mxu0 0.0
      %177 = vmatpush1.msra.mxu0 0.0
      %178 = vmatprep.subr.mxu0 0.0
      %179 = vmatpush1.msra.mxu0 0.0
      %180 = vmatprep.subr.mxu0 0.0
      %181 = vmatpush1.msra.mxu0 0.0
      %182 = vmatprep.subr.mxu0 0.0
      %183 = vmatpush1.msra.mxu0 0.0
      %184 = vmatprep.subr.mxu0 0.0
      %185 = vmatpush1.msra.mxu0 0.0
      %186 = vmatprep.subr.mxu0 0.0
      %187 = vmatpush1.msra.mxu0 0.0
      %188 = vmatprep.subr.mxu0 0.0
      %189 = vmatpush1.msra.mxu0 0.0
      %190 = vmatprep.subr.mxu0 0.0
      %191 = vmatpush1.msra.mxu0 0.0
      %192 = vmatprep.subr.mxu0 0.0
      %193 = vmatpush1.msra.mxu0 0.0
      %194 = vmatprep.mubr.f32.mxu0 0.0
      %195 = vmatmul.mubr.f32.gmra.mrb[0].mxu0 %v128
      %v196 = vpop.f32.mrb[0].mxu0
      %v197 = vadd.f32 0.0, %v196
      %v198 = vpop.f32.mrb[0].mxu0
      %199 = vdwg.mxu0
      %v201 = vsel %vm69, %v118, 0
      %203 = vmatprep.subr.mxu0 0.0
      %204 = vmatpush1.msra.mxu0 %v119
      %205 = vmatprep.subr.mxu0 0.0
      %206 = vmatpush1.msra.mxu0 %v120
      %207 = vmatprep.subr.mxu0 0.0
      %208 = vmatpush1.msra.mxu0 %v121
      %209 = vmatprep.subr.mxu0 0.0
      %210 = vmatpush1.msra.mxu0 %v122
      %211 = vmatprep.subr.mxu0 0.0
      %212 = vmatpush1.msra.mxu0 0.0
      %213 = vmatprep.subr.mxu0 0.0
      %214 = vmatpush1.msra.mxu0 0.0
      %215 = vmatprep.subr.mxu0 0.0
      %216 = vmatpush1.msra.mxu0 0.0
      %217 = vmatprep.subr.mxu0 0.0
      %218 = vmatpush1.msra.mxu0 0.0
      %219 = vmatprep.subr.mxu0 0.0
      %220 = vmatpush1.msra.mxu0 0.0
      %221 = vmatprep.subr.mxu0 0.0
      %222 = vmatpush1.msra.mxu0 0.0
      %223 = vmatprep.subr.mxu0 0.0
      %224 = vmatpush1.msra.mxu0 0.0
      %225 = vmatprep.subr.mxu0 0.0
      %226 = vmatpush1.msra.mxu0 0.0
      %227 = vmatprep.subr.mxu0 0.0
      %228 = vmatpush1.msra.mxu0 0.0
      %229 = vmatprep.subr.mxu0 0.0
      %230 = vmatpush1.msra.mxu0 0.0
      %231 = vmatprep.subr.mxu0 0.0
      %232 = vmatpush1.msra.mxu0 0.0
      %233 = vmatprep.subr.mxu0 0.0
      %234 = vmatpush1.msra.mxu0 0.0
      %235 = vmatprep.subr.mxu0 0.0
      %236 = vmatpush1.msra.mxu0 0.0
      %237 = vmatprep.subr.mxu0 0.0
      %238 = vmatpush1.msra.mxu0 0.0
      %239 = vmatprep.subr.mxu0 0.0
      %240 = vmatpush1.msra.mxu0 0.0
      %241 = vmatprep.subr.mxu0 0.0
      %242 = vmatpush1.msra.mxu0 0.0
      %243 = vmatprep.subr.mxu0 0.0
      %244 = vmatpush1.msra.mxu0 0.0
      %245 = vmatprep.subr.mxu0 0.0
      %246 = vmatpush1.msra.mxu0 0.0
      %247 = vmatprep.subr.mxu0 0.0
      %248 = vmatpush1.msra.mxu0 0.0
      %249 = vmatprep.subr.mxu0 0.0
      %250 = vmatpush1.msra.mxu0 0.0
      %251 = vmatprep.subr.mxu0 0.0
      %252 = vmatpush1.msra.mxu0 0.0
      %253 = vmatprep.subr.mxu0 0.0
      %254 = vmatpush1.msra.mxu0 0.0
      %255 = vmatprep.subr.mxu0 0.0
      %256 = vmatpush1.msra.mxu0 0.0
      %257 = vmatprep.subr.mxu0 0.0
      %258 = vmatpush1.msra.mxu0 0.0
      %259 = vmatprep.subr.mxu0 0.0
      %260 = vmatpush1.msra.mxu0 0.0
      %261 = vmatprep.subr.mxu0 0.0
      %262 = vmatpush1.msra.mxu0 0.0
      %263 = vmatprep.subr.mxu0 0.0
      %264 = vmatpush1.msra.mxu0 0.0
      %265 = vmatprep.subr.mxu0 0.0
      %266 = vmatpush1.msra.mxu0 0.0
      %267 = vmatprep.mubr.f32.mxu0 0.0
      %268 = vmatmul.mubr.f32.gmra.mrb[0].mxu0 %v201
      %v269 = vpop.f32.mrb[0].mxu0
      %v270 = vadd.f32 %v197, %v269
      %v271 = vpop.f32.mrb[0].mxu0
      %272 = vdwg.mxu0
      %v273 = vld [vmem:[%s3] sm:$0x1]
      %v275 = vlaneseq
      %v276 = vshrl.u32 %v275, 7
      %v277 = vsub.s32 0, %v276
      %v278 = vrot.slane %v273, %v277
      %v280 = vadd.f32 %v270, %v278
      %v281 = vtanh.pop %v280
      %282 = vst.msk [vmem:[#allocation10] sm:$0x3] %vm90, %v281
    $region37: #{tpu_custom_call.1} parent=1 // pred_fallthru
      _
    // Predicated region
    $region38: #{tpu_custom_call.1} parent=1 // pred_check
      _
    $region39: #{tpu_custom_call.1} parent=1 // pred_check_branch
      %284 = sbr.rel (0) target = $region41
    $region40: #{tpu_custom_call.1} parent=1 // pred_region
      %s286 = ssub.s32 32, 32
      %287 = vsyncadd [#allocation6], %s286
      %s289 = sshll.u32 [#allocation10], 4
      %s290 = int_to_ptr.vmem [resolvable:$true] %s289
      %292 = dma.vmem_to_hbm [thread:$0]  %s290, 32, %s4, [#allocation6]
    $region41: #{tpu_custom_call.1} parent=1 // pred_fallthru
      _
    // Predicated region
    $region42: #{tpu_custom_call.1} parent=1 // pred_check
      _
    $region43: #{tpu_custom_call.1} parent=1 // pred_check_branch
      %294 = sbr.rel (0) target = $region45
    $region44: #{tpu_custom_call.1} parent=1 // pred_region
      %295 = dma.done [#allocation6], 32
    $region45: #{tpu_custom_call.1} parent=1 // pred_fallthru
      _
    %296 = vsyncpa [#allocation5], 1
    %297 = vsyncpa [#allocation8], 1
    %298 = vsyncpa [#allocation6], 1

</llo_original>
